<compile_context>
chip_gen: v7x
topology: tpu7x:2x2x1
jax: 0.10.0
libtpu: 0.0.40
codegen_flags: <defaults>
</compile_context>

<pallas_src>
import functools

import jax
import jax.numpy as jnp
from jax import lax
from jax.experimental import pallas as pl
from jax.experimental.pallas import tpu as pltpu


def _round_up(v, m):
    return (v + m - 1) // m * m


def _cdiv(a, b):
    return (a + b - 1) // b


def _tree_max(vals):
    # Pairwise combine so independent maxima can overlap on the 4 VALUs.
    vals = list(vals)
    while len(vals) > 1:
        nxt = []
        for i in range(0, len(vals) - 1, 2):
            nxt.append(jnp.maximum(vals[i], vals[i + 1]))
        if len(vals) % 2:
            nxt.append(vals[-1])
        vals = nxt
    return vals[0]


def _gmp_kernel(x_ref, o_ref, acc_ref, *, min_val, rem, n_par):
    """Fold one (TM, TL) tile into a per-lane (TM, 128) running max."""
    k = pl.program_id(1)
    last = pl.num_programs(1) - 1

    @pl.when(k == 0)
    def _init():
        acc_ref[...] = jnp.full(acc_ref.shape, min_val, acc_ref.dtype)

    tm, tl = x_ref.shape
    n_chunks = tl // 128

    def accumulate(n_valid_chunks, tail):
        # Per-chunk ref loads (short live ranges) round-robined into a few
        # independent partials; `tail` masks the partially-valid final chunk.
        partials = [None] * max(1, min(n_par, n_valid_chunks))
        for c in range(n_valid_chunks):
            chunk = x_ref[:, c * 128:(c + 1) * 128]
            if tail and c == n_valid_chunks - 1:
                lane = lax.broadcasted_iota(jnp.int32, chunk.shape, 1)
                chunk = jnp.where(lane < tail, chunk, min_val)
            s = c % len(partials)
            partials[s] = chunk if partials[s] is None else jnp.maximum(partials[s], chunk)
        acc_ref[...] = jnp.maximum(acc_ref[...], _tree_max(partials))

    if rem == 0:
        # Every L tile is fully in-bounds.
        accumulate(n_chunks, 0)
    else:
        n_full = rem // 128
        tail = rem % 128
        n_valid = n_full + (1 if tail else 0)

        @pl.when(k != last)
        def _full_tile():
            accumulate(n_chunks, 0)

        @pl.when(k == last)
        def _ragged_tile():
            # Statically skip fully-OOB chunks; mask the single partial chunk.
            accumulate(n_valid, tail)

    @pl.when(k == last)
    def _finalize():
        # Single 128 -> 1 cross-lane (XLU) reduce per row tile per L sweep.
        o_ref[...] = jnp.max(acc_ref[...], axis=-1, keepdims=True).astype(o_ref.dtype)


def global_max_pool1d(x, *, force_pallas=False):
    """Global max pool over the length axis: (N, C, L) -> (N, C, 1)."""
    N, C, L = x.shape
    dtype = x.dtype
    itemsize = jnp.dtype(dtype).itemsize

    # Tiny inputs: pallas_call launch + per-step overhead dwarfs the work.
    if not force_pallas and N * C * L * itemsize < (1 << 21):
        return jnp.max(x, axis=2, keepdims=True)

    if jnp.issubdtype(dtype, jnp.floating):
        min_val = float("-inf")
    else:
        min_val = int(jnp.iinfo(dtype).min)

    # Flatten (N, C) rows so every vreg sublane is used regardless of C.
    R = N * C
    x2 = x.reshape(R, L)

    try:
        kind = jax.devices()[0].device_kind.lower()
    except Exception:
        kind = ""
    is_v7 = "v7" in kind

    sub = max(8, 32 // itemsize)                    # 8 f32 / 16 bf16 / 32 int8
    # Wide-and-short tiles: grow the contiguous L axis first, up to 64 KiB/row.
    tl_cap = max(128, (64 * 1024) // itemsize)
    tl = min(_round_up(L, 128), tl_cap)
    # ~8 MiB input tile -> 16 MiB double-buffered; fits every generation.
    target_tile_bytes = 8 * 1024 * 1024
    tm = max(sub, (target_tile_bytes // (tl * itemsize)) // sub * sub)
    tm = min(tm, 2048)                              # bound chunk/acc VMEM temporaries
    tm = min(tm, _round_up(R, sub))
    if is_v7 and R > sub:
        # Guarantee >= 2 row tiles so the "parallel" axis shards across both TCs.
        tm = min(tm, _round_up(_cdiv(R, 2), sub))

    grid = (_cdiv(R, tm), _cdiv(L, tl))
    rem = L % tl                                    # ragged last L tile (0 => none)

    # How many independent running maxima the chunk loop keeps live.
    vregs_per_chunk = max(1, (tm * 128 * itemsize) // 4096)
    n_par = max(1, min(4, 32 // vregs_per_chunk))

    kernel = functools.partial(_gmp_kernel, min_val=min_val, rem=rem, n_par=n_par)
    vmem_limit = (32 if is_v7 else 64) * 1024 * 1024

    out = pl.pallas_call(
        kernel,
        out_shape=jax.ShapeDtypeStruct((R, 1), dtype),
        grid_spec=pltpu.PrefetchScalarGridSpec(
            num_scalar_prefetch=0,
            grid=grid,
            in_specs=[pl.BlockSpec((tm, tl), lambda i, k: (i, k))],
            # Same output block across the reduction axis -> stays resident.
            out_specs=pl.BlockSpec((tm, 1), lambda i, k: (i, 0)),
            scratch_shapes=[pltpu.VMEM((tm, 128), dtype)],
        ),
        compiler_params=pltpu.CompilerParams(
            dimension_semantics=("parallel", "arbitrary"),
            vmem_limit_bytes=vmem_limit,
        ),
        cost_estimate=pl.CostEstimate(
            flops=R * L,
            transcendentals=0,
            bytes_accessed=R * L * itemsize + R * itemsize,
        ),
    )(x2)

    # PyTorch's max_pool1d with kernel_size == L keeps a trailing dim of 1.
    return out.reshape(N, C, 1)


if __name__ == "__main__":
    key = jax.random.PRNGKey(0)

    # Small shape consistent with the module: batch=2, channels=4, length=16.
    x = jax.random.normal(key, (2, 4, 16), dtype=jnp.float32)
    ref = jnp.max(x, axis=2, keepdims=True)

    # Default path (small-input fallback).
    out = jax.block_until_ready(global_max_pool1d(x))
    assert out.shape == (2, 4, 1)
    assert jnp.allclose(out, ref), "fallback path mismatch vs reference"

    # Force the Pallas kernel on the same small input (single-tile grid,
    # in-kernel lane masking for L=16 < 128).
    out_p = jax.block_until_ready(global_max_pool1d(x, force_pallas=True))
    assert jnp.allclose(out_p, ref), "pallas path mismatch vs reference"

    # Ragged L within a single tile, mostly-negative data so any padding bug
    # (garbage lanes winning the max) would be caught.
    x2 = jax.random.normal(jax.random.PRNGKey(0), (2, 4, 3000), dtype=jnp.float32) - 2.0
    out2 = jax.block_until_ready(global_max_pool1d(x2, force_pallas=True))
    assert jnp.allclose(out2, jnp.max(x2, axis=2, keepdims=True)), "ragged-L pallas mismatch"

    # Multi-step L reduction (several L tiles) + ragged final tile.
    x3 = jax.random.normal(jax.random.PRNGKey(0), (2, 4, 40000), dtype=jnp.float32) - 2.0
    out3 = jax.block_until_ready(global_max_pool1d(x3, force_pallas=True))
    assert jnp.allclose(out3, jnp.max(x3, axis=2, keepdims=True)), "tiled-reduction mismatch"

    # Non-multiple row count (row-edge block clipped on writeback).
    x4 = jax.random.normal(jax.random.PRNGKey(0), (3, 5, 260), dtype=jnp.float32) - 2.0
    out4 = jax.block_until_ready(global_max_pool1d(x4, force_pallas=True))
    assert jnp.allclose(out4, jnp.max(x4, axis=2, keepdims=True)), "ragged-rows mismatch"

    # bfloat16 path (different sublane multiple, exact max -> exact compare).
    x5 = (jax.random.normal(jax.random.PRNGKey(0), (2, 4, 300), dtype=jnp.float32) - 2.0
          ).astype(jnp.bfloat16)
    out5 = jax.block_until_ready(global_max_pool1d(x5, force_pallas=True))
    assert jnp.array_equal(out5, jnp.max(x5, axis=2, keepdims=True)), "bf16 pallas mismatch"

    print("KERNEL_OK")
</pallas_src>

<mosaic_0001>
module attributes {stable_mosaic.version = 11 : i64} {
  func.func @_gmp_kernel(%arg0: i32, %arg1: i32, %arg2: memref<8x128xf32, #tpu.memory_space<vmem>>, %arg3: memref<8x1xf32, #tpu.memory_space<vmem>>, %arg4: memref<8x128xf32, #tpu.memory_space<vmem>>) attributes {dimension_semantics = [#tpu.dimension_semantics<parallel>, #tpu.dimension_semantics<arbitrary>], iteration_bounds = array<i64: 1, 1>, scalar_prefetch = 0 : i64, scratch_operands = 1 : i64, tpu.core_type = #tpu.core_type<tc>, window_params = [{transform_indices = @transform_0, window_bounds = array<i64: 8, 128>}, {transform_indices = @transform_1, window_bounds = array<i64: 8, 1>}]} {
    %c0_i32 = arith.constant 0 : i32
    %0 = arith.cmpi eq, %arg1, %c0_i32 : i32
    %1 = arith.extui %0 : i1 to i32
    %c0_i32_0 = arith.constant 0 : i32
    %2 = arith.cmpi ne, %1, %c0_i32_0 : i32
    scf.if %2 {
      %cst = arith.constant 0xFF800000 : f32
      %12 = vector.broadcast %cst : f32 to vector<8x128xf32>
      %c0 = arith.constant 0 : index
      %c0_7 = arith.constant 0 : index
      %13 = vector.load %arg4[%c0, %c0_7] : memref<8x128xf32, #tpu.memory_space<vmem>>, vector<8x128xf32>
      tpu.vector_store %arg4[%c0, %c0_7], %12 {strides = array<i32>} : memref<8x128xf32, #tpu.memory_space<vmem>>, vector<8x128xf32>,
    } else {
    }
    %c0_i32_1 = arith.constant 0 : i32
    %3 = arith.cmpi ne, %arg1, %c0_i32_1 : i32
    %4 = arith.extui %3 : i1 to i32
    %c0_i32_2 = arith.constant 0 : i32
    %5 = arith.cmpi ne, %4, %c0_i32_2 : i32
    scf.if %5 {
      %c0 = arith.constant 0 : index
      %c0_7 = arith.constant 0 : index
      %12 = vector.load %arg2[%c0, %c0_7] : memref<8x128xf32, #tpu.memory_space<vmem>>, vector<8x128xf32>
      %c0_8 = arith.constant 0 : index
      %c0_9 = arith.constant 0 : index
      %13 = vector.load %arg4[%c0_8, %c0_9] : memref<8x128xf32, #tpu.memory_space<vmem>>, vector<8x128xf32>
      %14 = arith.maximumf %13, %12 : vector<8x128xf32>
      %c0_10 = arith.constant 0 : index
      %c0_11 = arith.constant 0 : index
      %15 = vector.load %arg4[%c0_10, %c0_11] : memref<8x128xf32, #tpu.memory_space<vmem>>, vector<8x128xf32>
      tpu.vector_store %arg4[%c0_10, %c0_11], %14 {strides = array<i32>} : memref<8x128xf32, #tpu.memory_space<vmem>>, vector<8x128xf32>,
    } else {
    }
    %c0_i32_3 = arith.constant 0 : i32
    %6 = arith.cmpi eq, %arg1, %c0_i32_3 : i32
    %7 = arith.extui %6 : i1 to i32
    %c0_i32_4 = arith.constant 0 : i32
    %8 = arith.cmpi ne, %7, %c0_i32_4 : i32
    scf.if %8 {
      %c0 = arith.constant 0 : index
      %c0_7 = arith.constant 0 : index
      %12 = vector.load %arg2[%c0, %c0_7] : memref<8x128xf32, #tpu.memory_space<vmem>>, vector<8x128xf32>
      %13 = tpu.iota {dimensions = array<i32: 1>} : vector<8x128xi32>
      %c16_i32 = arith.constant 16 : i32
      %14 = vector.broadcast %c16_i32 : i32 to vector<8x128xi32>
      %15 = arith.cmpi slt, %13, %14 : vector<8x128xi32>
      %cst = arith.constant 0xFF800000 : f32
      %16 = vector.broadcast %cst : f32 to vector<8x128xf32>
      %17 = arith.select %15, %12, %16 : vector<8x128xi1>, vector<8x128xf32>
      %c0_8 = arith.constant 0 : index
      %c0_9 = arith.constant 0 : index
      %18 = vector.load %arg4[%c0_8, %c0_9] : memref<8x128xf32, #tpu.memory_space<vmem>>, vector<8x128xf32>
      %19 = arith.maximumf %18, %17 : vector<8x128xf32>
      %c0_10 = arith.constant 0 : index
      %c0_11 = arith.constant 0 : index
      %20 = vector.load %arg4[%c0_10, %c0_11] : memref<8x128xf32, #tpu.memory_space<vmem>>, vector<8x128xf32>
      tpu.vector_store %arg4[%c0_10, %c0_11], %19 {strides = array<i32>} : memref<8x128xf32, #tpu.memory_space<vmem>>, vector<8x128xf32>,
    } else {
    }
    %c0_i32_5 = arith.constant 0 : i32
    %9 = arith.cmpi eq, %arg1, %c0_i32_5 : i32
    %10 = arith.extui %9 : i1 to i32
    %c0_i32_6 = arith.constant 0 : i32
    %11 = arith.cmpi ne, %10, %c0_i32_6 : i32
    scf.if %11 {
      %c0 = arith.constant 0 : index
      %c0_7 = arith.constant 0 : index
      %12 = vector.load %arg4[%c0, %c0_7] : memref<8x128xf32, #tpu.memory_space<vmem>>, vector<8x128xf32>
      %cst = arith.constant dense<0xFF800000> : vector<8xf32>
      %13 = vector.multi_reduction <maximumf>, %12, %cst [1] : vector<8x128xf32> to vector<8xf32>
      %14 = vector.shape_cast %13 : vector<8xf32> to vector<8x1xf32>
      %c0_8 = arith.constant 0 : index
      %c0_9 = arith.constant 0 : index
      %15 = vector.load %arg3[%c0_8, %c0_9] : memref<8x1xf32, #tpu.memory_space<vmem>>, vector<8x1xf32>
      tpu.vector_store %arg3[%c0_8, %c0_9], %14 {strides = array<i32>} : memref<8x1xf32, #tpu.memory_space<vmem>>, vector<8x1xf32>,
    } else {
    }
    return
  }
  func.func @transform_0(%arg0: i32, %arg1: i32) -> (i32, i32) {
    %c0_i32 = arith.constant 0 : i32
    return %arg0, %arg1 : i32, i32
  }
  func.func @transform_1(%arg0: i32, %arg1: i32) -> (i32, i32) {
    %c0_i32 = arith.constant 0 : i32
    %c0_i32_0 = arith.constant 0 : i32
    return %arg0, %c0_i32 : i32, i32
  }
}

</mosaic_0001>

<llo_original>
// kernel: tpu_custom_call.1
$region0: #{tpu_custom_call.1}
  #allocation0 [shape = 'u32[]', space=smem, size = 0x4, offset = 0x4, fixed_abs, tag = 'smem constant byte address 0x4 - core index']
  #allocation1 [shape = 'u32[144,128]{1,0:T(1,128)}', space=vmem, size = 0x12000, scoped, tag = 'internal scratch']
  #allocation2 [shape = 'f32[8,128]{1,0:T(8,128)}', space=vmem, size = 0x1000, scoped, tag = 'scratch operand']
  %s0 = inlined_call_operand.hbm [shape: f32[8,16], index: 0, kind: input, shape index: {}]
  %s1 = inlined_call_operand.hbm [shape: f32[8,1], index: 1, kind: output, shape index: {}]
  %s2 = sld [smem:[#allocation0]]
  $region30: #{tpu_custom_call.1} parent=0
    _
  %s4 = ssub.s32 1, %s2
  %s5 = scalar_select 0, %s4, %s2
  $region1: #{tpu_custom_call.1} parent=0
    #allocation3 [shape = 'u8[4096]{0}', space=vmem, size = 0x1000, scoped, tag = 'input window, operand 0, single buffered']
    #allocation4 [shape = 's32[1]{0}', space=sflag, size = 0x4, scoped, tag = 'scoped memory for tpu_custom_call.1']
    #allocation5 [shape = 's32[1]{0}', space=sflag, size = 0x4, scoped, tag = 'scoped memory for tpu_custom_call.1']
    #allocation6 [shape = 'u8[4096]{0}', space=vmem, size = 0x1000, scoped, tag = 'output window, operand 0, single buffered']
    %6 = vsyncpa [#allocation4], 0
    %7 = vsyncpa [#allocation5], 0
    // Predicated region
    $region2: #{tpu_custom_call.1} parent=1 // pred_check
      _
    $region3: #{tpu_custom_call.1} parent=1 // pred_check_branch
      %9 = sbr.rel (0) target = $region5
    $region4: #{tpu_custom_call.1} parent=1 // pred_region
      %s11 = ssub.s32 128, 128
      %12 = vsyncadd [#allocation4], %s11
      %s14 = sshll.u32 [#allocation3], 4
      %s15 = int_to_ptr.vmem [resolvable:$true] %s14
      %17 = dma.hbm_to_vmem [thread:$0]  %s0, 128, %s15, [#allocation4]
    $region5: #{tpu_custom_call.1} parent=1 // pred_fallthru
      _
    // Predicated region
    $region6: #{tpu_custom_call.1} parent=1 // pred_check
      _
    $region7: #{tpu_custom_call.1} parent=1 // pred_check_branch
      %19 = sbr.rel (0) target = $region9
    $region8: #{tpu_custom_call.1} parent=1 // pred_region
      %20 = dma.done [#allocation4], 128
    $region9: #{tpu_custom_call.1} parent=1 // pred_fallthru
      _
    %p21 = scmp.eq.s32.totalorder 0, 0
    // Predicated region
    $region10: #{tpu_custom_call.1} parent=1 // pred_check
      %p22 = pneg %p21
    $region11: #{tpu_custom_call.1} parent=1 // pred_check_branch
      %24 = sbr.rel (%p22) target = $region13
    $region12: #{tpu_custom_call.1} parent=1 // pred_region
      %25 = vst [vmem:[#allocation2] sm:$0xff] -inf
    $region13: #{tpu_custom_call.1} parent=1 // pred_fallthru
      _
    %p26 = scmp.ne.s32.totalorder 0, 0
    // Predicated region
    $region14: #{tpu_custom_call.1} parent=1 // pred_check
      %p27 = pneg %p26
    $region15: #{tpu_custom_call.1} parent=1 // pred_check_branch
      %29 = sbr.rel (%p27) target = $region17
    $region16: #{tpu_custom_call.1} parent=1 // pred_region
      %v30 = vld [vmem:[#allocation3] sm:$0xff]
      %v31 = vld [vmem:[#allocation2] sm:$0xff]
      %v32 = vmax.f32 %v31, %v30
      %33 = vst [vmem:[#allocation2] sm:$0xff] %v32
    $region17: #{tpu_custom_call.1} parent=1 // pred_fallthru
      _
    // Predicated region
    $region18: #{tpu_custom_call.1} parent=1 // pred_check
      %p34 = pneg %p21
    $region19: #{tpu_custom_call.1} parent=1 // pred_check_branch
      %36 = sbr.rel (%p34) target = $region21
    $region20: #{tpu_custom_call.1} parent=1 // pred_region
      %v37 = vld [vmem:[#allocation3] sm:$0xff]
      %v38 = vlaneseq
      %v39 = vand.u32 %v38, 127
      %vm40 = vcmp.lt.s32.totalorder %v39, 16
      %v41 = vsel %vm40, %v37, -inf
      %v42 = vld [vmem:[#allocation2] sm:$0xff]
      %v43 = vmax.f32 %v42, %v41
      %44 = vst [vmem:[#allocation2] sm:$0xff] %v43
      %v45 = vld [vmem:[#allocation2] sm:$0xff]
      %46 = vmax.xlane.f32.xlu0 %v45
      %v47 = vpop.xlane.xlu0 %46
      %vm48 = vcmask 7168
      %49 = vst.msk [vmem:[#allocation6] sm:$0xff] %vm48, %v47
    $region21: #{tpu_custom_call.1} parent=1 // pred_fallthru
      _
    // Predicated region
    $region22: #{tpu_custom_call.1} parent=1 // pred_check
      _
    $region23: #{tpu_custom_call.1} parent=1 // pred_check_branch
      %51 = sbr.rel (0) target = $region25
    $region24: #{tpu_custom_call.1} parent=1 // pred_region
      %s53 = ssub.s32 128, 128
      %54 = vsyncadd [#allocation5], %s53
      %s56 = sshll.u32 [#allocation6], 4
      %s57 = int_to_ptr.vmem [resolvable:$true] %s56
      %59 = dma.vmem_to_hbm [thread:$0]  %s57, 128, %s1, [#allocation5]
    $region25: #{tpu_custom_call.1} parent=1 // pred_fallthru
      _
    // Predicated region
    $region26: #{tpu_custom_call.1} parent=1 // pred_check
      _
    $region27: #{tpu_custom_call.1} parent=1 // pred_check_branch
      %61 = sbr.rel (0) target = $region29
    $region28: #{tpu_custom_call.1} parent=1 // pred_region
      %62 = dma.done [#allocation5], 128
    $region29: #{tpu_custom_call.1} parent=1 // pred_fallthru
      _
    %63 = vsyncpa [#allocation4], 1
    %64 = vsyncpa [#allocation5], 1

</llo_original>
